<compile_context>
chip_gen: v7x
topology: tpu7x:2x2x1
jax: 0.10.0
libtpu: 0.0.40
codegen_flags: <defaults>
</compile_context>

<pallas_src>
import jax
import jax.numpy as jnp
import numpy as np
from jax.experimental import pallas as pl
from jax.experimental.pallas import tpu as pltpu


# ----------------------------------------------------------------------------
# Pallas kernel: masked blend of the three padded Lame/density fields (elementwise, VPU)
# ----------------------------------------------------------------------------
def _mask_blend_kernel(mask_ref, lam_ref, mu_ref, den_ref,
                       lam_bg_ref, mu_bg_ref, den_bg_ref,
                       lam_out_ref, mu_out_ref, den_out_ref):
    # Exact module math (handles fractional / tapered masks): X = Mask*X_pad + (1-Mask)*X_ref
    m = mask_ref[...]
    w = 1.0 - m
    lam_out_ref[...] = m * lam_ref[...] + w * lam_bg_ref[...]
    mu_out_ref[...] = m * mu_ref[...] + w * mu_bg_ref[...]
    den_out_ref[...] = m * den_ref[...] + w * den_bg_ref[...]


def _replicate_pad(x, nPml, nPad):
    # ft.padding: nPml on top/left/right, nPml+nPad on the bottom, replicate ("edge") mode.
    return jnp.pad(x, ((nPml, nPml + nPad), (nPml, nPml)), mode="edge")


def _round_up(a, b):
    return (a + b - 1) // b * b


def _choose_tile_rows(nz_pad, nx_pad):
    """Row-tile size: multiple of 8, >= ~4 grid steps when possible, <= ~1 MiB f32 per tile."""
    MAX_TILE_ELEMS = 256 * 1024                    # 1 MiB of f32 per stream per buffer
    cap = max(8, (MAX_TILE_ELEMS // max(nx_pad, 1)) // 8 * 8)
    target = max(8, _round_up(pl.cdiv(nz_pad, 4), 8))   # -> >= 4 tiles when nz_pad allows
    tile = min(cap, target)
    return min(tile, _round_up(nz_pad, 8))


def fwi_lame_den_forward(Lam, Mu, Den, Lam_ref, Mu_ref, Den_ref, Mask,
                         nz, nx, nPml, nPad):
    """Pallas implementation of FWI_Lame_Den.forward up to the CUDA FWI solver call.

    Lam, Mu, Den              : (nz, nx) current model parameters
    Lam_ref, Mu_ref, Den_ref  : already-padded reference models, (nz_pad, nx_pad)
    Mask                      : (nz_pad, nx_pad) float mask, or None (module default = all-ones)
    Returns (Lam_mask_pad, Mu_mask_pad, Den_mask_pad), each (nz_pad, nx_pad) float32 —
    exactly the tensors handed to the CUDA elastic-wave solver.
    """
    nz_pad = nz + 2 * nPml + nPad
    nx_pad = nx + 2 * nPml

    for name, ref in (("Lam_ref", Lam_ref), ("Mu_ref", Mu_ref), ("Den_ref", Den_ref)):
        assert ref.shape == (nz_pad, nx_pad), (
            f"{name} must already be padded to {(nz_pad, nx_pad)}, got {ref.shape}")

    # ft.padding: replicate-pad the model fields (same HBM passes as the original module).
    Lam_pad = _replicate_pad(jnp.asarray(Lam, jnp.float32), nPml, nPad)
    Mu_pad = _replicate_pad(jnp.asarray(Mu, jnp.float32), nPml, nPad)
    Den_pad = _replicate_pad(jnp.asarray(Den, jnp.float32), nPml, nPad)

    if Mask is None:
        # Module default (all-ones mask): the blend is the identity — skip the kernel and
        # its 7 extra HBM streams entirely.
        return Lam_pad, Mu_pad, Den_pad

    assert Mask.shape == (nz_pad, nx_pad), (
        f"Mask must have shape {(nz_pad, nx_pad)}, got {Mask.shape}")

    tile_z = _choose_tile_rows(nz_pad, nx_pad)
    num_tiles = pl.cdiv(nz_pad, tile_z)

    # Natural layout: last block dim == full array dim (exempt from the 128 rule),
    # second-to-last is a multiple of 8. Partial last row-block is handled by Pallas.
    spec = pl.BlockSpec((tile_z, nx_pad), lambda i: (i, 0))
    out_sds = jax.ShapeDtypeStruct((nz_pad, nx_pad), jnp.float32)

    # Double-buffered VMEM need: 10 f32 streams (7 in + 3 out), two buffers each, + headroom.
    tile_bytes = tile_z * nx_pad * 4
    vmem_limit = min(100 << 20, 2 * 10 * tile_bytes + (8 << 20))

    lam_o, mu_o, den_o = pl.pallas_call(
        _mask_blend_kernel,
        grid=(num_tiles,),
        out_shape=(out_sds, out_sds, out_sds),
        in_specs=[spec] * 7,
        out_specs=(spec, spec, spec),
        # Padded model fields are dead after the call -> donate them to the outputs.
        input_output_aliases={1: 0, 2: 1, 3: 2},
        compiler_params=pltpu.CompilerParams(
            dimension_semantics=("parallel",),
            vmem_limit_bytes=vmem_limit),
    )(jnp.asarray(Mask, jnp.float32), Lam_pad, Mu_pad, Den_pad,
      jnp.asarray(Lam_ref, jnp.float32), jnp.asarray(Mu_ref, jnp.float32),
      jnp.asarray(Den_ref, jnp.float32))

    # TODO(synk): FWIFunction.apply (fwi_ops.backward — full CUDA time-domain elastic-wave
    # propagation / misfit) has no Pallas equivalent; return the (Lam, Mu, Den) fields it
    # would consume.
    return lam_o, mu_o, den_o


if __name__ == "__main__":
    # Small, FWI-consistent geometry.
    nz, nx = 16, 16
    nPml, nPad = 4, 4
    nz_pad = nz + 2 * nPml + nPad   # 28
    nx_pad = nx + 2 * nPml          # 24

    key = jax.random.PRNGKey(0)
    k1, k2, k3, k4 = jax.random.split(key, 4)

    # Model parameters (module __init__ takes Lam, Mu, Den of shape (nz, nx)).
    Lam = 1.1e10 + 5.0e8 * jax.random.normal(k1, (nz, nx), dtype=jnp.float32)
    Mu = 5.6e9 + 2.0e8 * jax.random.normal(k2, (nz, nx), dtype=jnp.float32)
    Den = 2500.0 + 100.0 * jax.random.normal(k3, (nz, nx), dtype=jnp.float32)

    def pad2d(x):
        return jnp.pad(x, ((nPml, nPml + nPad), (nPml, nPml)), mode="edge")

    # Reference (background) models = padded copies of slightly perturbed initial models,
    # mirroring the register_buffer(...) clones made at __init__ time.
    Lam_ref = pad2d(Lam * 0.95)
    Mu_ref = pad2d(Mu * 0.95)
    Den_ref = pad2d(Den * 0.95)

    # Fractional (tapered) mask to exercise the exact lerp path.
    Mask = jax.random.uniform(k4, (nz_pad, nx_pad), dtype=jnp.float32)

    # Source time function / shot ids: only consumed by the untranslatable CUDA FWI solver.
    Stf = jnp.sin(jnp.linspace(0.0, 6.28, 64, dtype=jnp.float32))[None, :]  # (n_src=1, nt=64)
    Shot_ids = jnp.arange(1, dtype=jnp.int32)

    # ---- masked path (runs the Pallas kernel) ----
    lam_m, mu_m, den_m = fwi_lame_den_forward(Lam, Mu, Den, Lam_ref, Mu_ref, Den_ref, Mask,
                                              nz, nx, nPml, nPad)
    jax.block_until_ready((lam_m, mu_m, den_m))

    lam_expect = Mask * pad2d(Lam) + (1.0 - Mask) * Lam_ref
    mu_expect = Mask * pad2d(Mu) + (1.0 - Mask) * Mu_ref
    den_expect = Mask * pad2d(Den) + (1.0 - Mask) * Den_ref
    assert np.allclose(np.asarray(lam_m), np.asarray(lam_expect), rtol=1e-6, atol=1e-3)
    assert np.allclose(np.asarray(mu_m), np.asarray(mu_expect), rtol=1e-6, atol=1e-3)
    assert np.allclose(np.asarray(den_m), np.asarray(den_expect), rtol=1e-6, atol=1e-3)

    # ---- module-default (Mask=None / all-ones) fast path ----
    lam_d, mu_d, den_d = fwi_lame_den_forward(Lam, Mu, Den, Lam_ref, Mu_ref, Den_ref, None,
                                              nz, nx, nPml, nPad)
    jax.block_until_ready((lam_d, mu_d, den_d))
    assert np.allclose(np.asarray(lam_d), np.asarray(pad2d(Lam)), rtol=1e-6, atol=0.0)
    assert np.allclose(np.asarray(mu_d), np.asarray(pad2d(Mu)), rtol=1e-6, atol=0.0)
    assert np.allclose(np.asarray(den_d), np.asarray(pad2d(Den)), rtol=1e-6, atol=0.0)

    print("KERNEL_OK")
</pallas_src>

<mosaic_0001>
module attributes {stable_mosaic.version = 11 : i64} {
  func.func @_mask_blend_kernel(%arg0: i32, %arg1: memref<8x24xf32, #tpu.memory_space<vmem>>, %arg2: memref<8x24xf32, #tpu.memory_space<vmem>>, %arg3: memref<8x24xf32, #tpu.memory_space<vmem>>, %arg4: memref<8x24xf32, #tpu.memory_space<vmem>>, %arg5: memref<8x24xf32, #tpu.memory_space<vmem>>, %arg6: memref<8x24xf32, #tpu.memory_space<vmem>>, %arg7: memref<8x24xf32, #tpu.memory_space<vmem>>, %arg8: memref<8x24xf32, #tpu.memory_space<vmem>>, %arg9: memref<8x24xf32, #tpu.memory_space<vmem>>, %arg10: memref<8x24xf32, #tpu.memory_space<vmem>>) attributes {dimension_semantics = [#tpu.dimension_semantics<parallel>], iteration_bounds = array<i64: 4>, scalar_prefetch = 0 : i64, scratch_operands = 0 : i64, tpu.core_type = #tpu.core_type<tc>, window_params = [{transform_indices = @transform_0, window_bounds = array<i64: 8, 24>}, {transform_indices = @transform_1, window_bounds = array<i64: 8, 24>}, {transform_indices = @transform_2, window_bounds = array<i64: 8, 24>}, {transform_indices = @transform_3, window_bounds = array<i64: 8, 24>}, {transform_indices = @transform_4, window_bounds = array<i64: 8, 24>}, {transform_indices = @transform_5, window_bounds = array<i64: 8, 24>}, {transform_indices = @transform_6, window_bounds = array<i64: 8, 24>}, {transform_indices = @transform_7, window_bounds = array<i64: 8, 24>}, {transform_indices = @transform_8, window_bounds = array<i64: 8, 24>}, {transform_indices = @transform_9, window_bounds = array<i64: 8, 24>}]} {
    %c0 = arith.constant 0 : index
    %c0_0 = arith.constant 0 : index
    %0 = vector.load %arg1[%c0, %c0_0] : memref<8x24xf32, #tpu.memory_space<vmem>>, vector<8x24xf32>
    %cst = arith.constant 1.000000e+00 : f32
    %1 = vector.broadcast %cst : f32 to vector<8x24xf32>
    %2 = arith.subf %1, %0 : vector<8x24xf32>
    %c0_1 = arith.constant 0 : index
    %c0_2 = arith.constant 0 : index
    %3 = vector.load %arg2[%c0_1, %c0_2] : memref<8x24xf32, #tpu.memory_space<vmem>>, vector<8x24xf32>
    %4 = arith.mulf %0, %3 : vector<8x24xf32>
    %c0_3 = arith.constant 0 : index
    %c0_4 = arith.constant 0 : index
    %5 = vector.load %arg5[%c0_3, %c0_4] : memref<8x24xf32, #tpu.memory_space<vmem>>, vector<8x24xf32>
    %6 = arith.mulf %2, %5 : vector<8x24xf32>
    %7 = arith.addf %4, %6 : vector<8x24xf32>
    %c0_5 = arith.constant 0 : index
    %c0_6 = arith.constant 0 : index
    %8 = vector.load %arg8[%c0_5, %c0_6] : memref<8x24xf32, #tpu.memory_space<vmem>>, vector<8x24xf32>
    tpu.vector_store %arg8[%c0_5, %c0_6], %7 {strides = array<i32>} : memref<8x24xf32, #tpu.memory_space<vmem>>, vector<8x24xf32>,
    %c0_7 = arith.constant 0 : index
    %c0_8 = arith.constant 0 : index
    %9 = vector.load %arg3[%c0_7, %c0_8] : memref<8x24xf32, #tpu.memory_space<vmem>>, vector<8x24xf32>
    %10 = arith.mulf %0, %9 : vector<8x24xf32>
    %c0_9 = arith.constant 0 : index
    %c0_10 = arith.constant 0 : index
    %11 = vector.load %arg6[%c0_9, %c0_10] : memref<8x24xf32, #tpu.memory_space<vmem>>, vector<8x24xf32>
    %12 = arith.mulf %2, %11 : vector<8x24xf32>
    %13 = arith.addf %10, %12 : vector<8x24xf32>
    %c0_11 = arith.constant 0 : index
    %c0_12 = arith.constant 0 : index
    %14 = vector.load %arg9[%c0_11, %c0_12] : memref<8x24xf32, #tpu.memory_space<vmem>>, vector<8x24xf32>
    tpu.vector_store %arg9[%c0_11, %c0_12], %13 {strides = array<i32>} : memref<8x24xf32, #tpu.memory_space<vmem>>, vector<8x24xf32>,
    %c0_13 = arith.constant 0 : index
    %c0_14 = arith.constant 0 : index
    %15 = vector.load %arg4[%c0_13, %c0_14] : memref<8x24xf32, #tpu.memory_space<vmem>>, vector<8x24xf32>
    %16 = arith.mulf %0, %15 : vector<8x24xf32>
    %c0_15 = arith.constant 0 : index
    %c0_16 = arith.constant 0 : index
    %17 = vector.load %arg7[%c0_15, %c0_16] : memref<8x24xf32, #tpu.memory_space<vmem>>, vector<8x24xf32>
    %18 = arith.mulf %2, %17 : vector<8x24xf32>
    %19 = arith.addf %16, %18 : vector<8x24xf32>
    %c0_17 = arith.constant 0 : index
    %c0_18 = arith.constant 0 : index
    %20 = vector.load %arg10[%c0_17, %c0_18] : memref<8x24xf32, #tpu.memory_space<vmem>>, vector<8x24xf32>
    tpu.vector_store %arg10[%c0_17, %c0_18], %19 {strides = array<i32>} : memref<8x24xf32, #tpu.memory_space<vmem>>, vector<8x24xf32>,
    return
  }
  func.func @transform_0(%arg0: i32) -> (i32, i32) {
    %c0_i32 = arith.constant 0 : i32
    %c0_i32_0 = arith.constant 0 : i32
    return %arg0, %c0_i32 : i32, i32
  }
  func.func @transform_1(%arg0: i32) -> (i32, i32) {
    %c0_i32 = arith.constant 0 : i32
    %c0_i32_0 = arith.constant 0 : i32
    return %arg0, %c0_i32 : i32, i32
  }
  func.func @transform_2(%arg0: i32) -> (i32, i32) {
    %c0_i32 = arith.constant 0 : i32
    %c0_i32_0 = arith.constant 0 : i32
    return %arg0, %c0_i32 : i32, i32
  }
  func.func @transform_3(%arg0: i32) -> (i32, i32) {
    %c0_i32 = arith.constant 0 : i32
    %c0_i32_0 = arith.constant 0 : i32
    return %arg0, %c0_i32 : i32, i32
  }
  func.func @transform_4(%arg0: i32) -> (i32, i32) {
    %c0_i32 = arith.constant 0 : i32
    %c0_i32_0 = arith.constant 0 : i32
    return %arg0, %c0_i32 : i32, i32
  }
  func.func @transform_5(%arg0: i32) -> (i32, i32) {
    %c0_i32 = arith.constant 0 : i32
    %c0_i32_0 = arith.constant 0 : i32
    return %arg0, %c0_i32 : i32, i32
  }
  func.func @transform_6(%arg0: i32) -> (i32, i32) {
    %c0_i32 = arith.constant 0 : i32
    %c0_i32_0 = arith.constant 0 : i32
    return %arg0, %c0_i32 : i32, i32
  }
  func.func @transform_7(%arg0: i32) -> (i32, i32) {
    %c0_i32 = arith.constant 0 : i32
    %c0_i32_0 = arith.constant 0 : i32
    return %arg0, %c0_i32 : i32, i32
  }
  func.func @transform_8(%arg0: i32) -> (i32, i32) {
    %c0_i32 = arith.constant 0 : i32
    %c0_i32_0 = arith.constant 0 : i32
    return %arg0, %c0_i32 : i32, i32
  }
  func.func @transform_9(%arg0: i32) -> (i32, i32) {
    %c0_i32 = arith.constant 0 : i32
    %c0_i32_0 = arith.constant 0 : i32
    return %arg0, %c0_i32 : i32, i32
  }
}

</mosaic_0001>

<llo_original>
// kernel: tpu_custom_call.1
$region0: #{tpu_custom_call.1}
  #allocation0 [shape = 'u32[]', space=smem, size = 0x4, offset = 0x4, fixed_abs, tag = 'smem constant byte address 0x4 - core index']
  #allocation1 [shape = 'u32[144,128]{1,0:T(1,128)}', space=vmem, size = 0x12000, scoped, tag = 'internal scratch']
  %s0 = inlined_call_operand.vmem [shape: f32[28,24], index: 0, kind: input, shape index: {}]
  %s1 = inlined_call_operand.vmem [shape: f32[28,24], index: 1, kind: input, shape index: {}, may-alias: {1,7}]
  %s2 = inlined_call_operand.vmem [shape: f32[28,24], index: 2, kind: input, shape index: {}, may-alias: {2,8}]
  %s3 = inlined_call_operand.vmem [shape: f32[28,24], index: 3, kind: input, shape index: {}, may-alias: {3,9}]
  %s4 = inlined_call_operand.vmem [shape: f32[28,24], index: 4, kind: input, shape index: {}]
  %s5 = inlined_call_operand.vmem [shape: f32[28,24], index: 5, kind: input, shape index: {}]
  %s6 = inlined_call_operand.vmem [shape: f32[28,24], index: 6, kind: input, shape index: {}]
  %s7 = inlined_call_operand.vmem [shape: f32[28,24], index: 7, kind: output, shape index: {0}, may-alias: {1,7}]
  %s8 = inlined_call_operand.vmem [shape: f32[28,24], index: 8, kind: output, shape index: {1}, may-alias: {2,8}]
  %s9 = inlined_call_operand.vmem [shape: f32[28,24], index: 9, kind: output, shape index: {2}, may-alias: {3,9}]
  %10 = xla_tuple %s7, %s8, %s9
  %s11 = sld [smem:[#allocation0]]
  $region77: #{tpu_custom_call.1} parent=0
    _
  %s13 = ssub.s32 1, %s11
  %s14 = scalar_select 0, %s13, %s11
  loop: start=0, step=1, limit=6
  $region2: #{tpu_custom_call.1} parent=0 // loop_pre_header
    _
  $region3: #{tpu_custom_call.1} parent=0 // loop_header
    %s16 = sphi 0, %s20
    %p17 = scmp.ge.s32.totalorder %s16, 6
    %s26 = sphi 0, %s28
    %s29 = sphi 0, %s26
    %s30 = sphi 0, %s29
    %s46 = sphi 0, %s30
    %s52 = sphi 0, %s54
    %s55 = sphi 0, %s52
    %s56 = sphi 0, %s55
    %s72 = sphi 0, %s56
    %s78 = sphi 0, %s80
    %s81 = sphi 0, %s78
    %s82 = sphi 0, %s81
    %s98 = sphi 0, %s82
    %s104 = sphi 0, %s106
    %s107 = sphi 0, %s104
    %s108 = sphi 0, %s107
    %s124 = sphi 0, %s108
    %s130 = sphi 0, %s132
    %s133 = sphi 0, %s130
    %s134 = sphi 0, %s133
    %s150 = sphi 0, %s134
    %s156 = sphi 0, %s158
    %s159 = sphi 0, %s156
    %s160 = sphi 0, %s159
    %s176 = sphi 0, %s160
    %s182 = sphi 0, %s184
    %s185 = sphi 0, %s182
    %s186 = sphi 0, %s185
    %s202 = sphi 0, %s186
    %s208 = sphi 0, %s210
    %s211 = sphi 0, %s208
    %s212 = sphi 0, %s211
    %s228 = sphi 0, %s212
    %s234 = sphi 0, %s236
    %s237 = sphi 0, %s234
    %s238 = sphi 0, %s237
    %s254 = sphi 0, %s238
    %s260 = sphi 0, %s262
    %s263 = sphi 0, %s260
    %s264 = sphi 0, %s263
    %s280 = sphi 0, %s264
  $region4: #{tpu_custom_call.1} parent=0 // loop_header_branch
    %19 = sbr.rel (%p17) target = $region8
  $region5: #{tpu_custom_call.1} parent=0 // loop_body
    %s21 = ssub.s32 %s16, 1
    %s22 = ssub.s32 %s16, 2
    %s23 = sadd.s32 %s16, 1
    %s24 = ssub.s32 %s16, %s23
    %p25 = scmp.eq.s32.totalorder %s24, 0
    %s27 = sadd.s32 %s26, 1
    %s28 = scalar_select %p25, %s26, %s27
    %p31 = pneg %p25
    %p32 = scmp.eq.s32.totalorder %s16, 3
    %p33 = por %p31, %p32
    %p34 = scmp.ne.s32.totalorder %s26, %s29
    %p35 = scmp.eq.s32.totalorder %s16, 0
    %p36 = por %p34, %p35
    %p37 = scmp.ne.s32.totalorder %s26, %s29
    %p38 = scmp.eq.s32.totalorder %s21, 3
    %p39 = por %p37, %p38
    %p40 = scmp.ne.s32.totalorder %s29, %s30
    %p41 = scmp.eq.s32.totalorder %s21, 0
    %p42 = por %p40, %p41
    %p43 = scmp.ne.s32.totalorder %s29, %s30
    %p44 = scmp.eq.s32.totalorder %s22, 3
    %p45 = por %p43, %p44
    %p47 = scmp.ne.s32.totalorder %s30, %s46
    %p48 = scmp.eq.s32.totalorder %s22, 0
    %p49 = por %p47, %p48
    %s50 = ssub.s32 %s16, %s23
    %p51 = scmp.eq.s32.totalorder %s50, 0
    %s53 = sadd.s32 %s52, 1
    %s54 = scalar_select %p51, %s52, %s53
    %p57 = pneg %p51
    %p58 = scmp.eq.s32.totalorder %s16, 3
    %p59 = por %p57, %p58
    %p60 = scmp.ne.s32.totalorder %s52, %s55
    %p61 = scmp.eq.s32.totalorder %s16, 0
    %p62 = por %p60, %p61
    %p63 = scmp.ne.s32.totalorder %s52, %s55
    %p64 = scmp.eq.s32.totalorder %s21, 3
    %p65 = por %p63, %p64
    %p66 = scmp.ne.s32.totalorder %s55, %s56
    %p67 = scmp.eq.s32.totalorder %s21, 0
    %p68 = por %p66, %p67
    %p69 = scmp.ne.s32.totalorder %s55, %s56
    %p70 = scmp.eq.s32.totalorder %s22, 3
    %p71 = por %p69, %p70
    %p73 = scmp.ne.s32.totalorder %s56, %s72
    %p74 = scmp.eq.s32.totalorder %s22, 0
    %p75 = por %p73, %p74
    %s76 = ssub.s32 %s16, %s23
    %p77 = scmp.eq.s32.totalorder %s76, 0
    %s79 = sadd.s32 %s78, 1
    %s80 = scalar_select %p77, %s78, %s79
    %p83 = pneg %p77
    %p84 = scmp.eq.s32.totalorder %s16, 3
    %p85 = por %p83, %p84
    %p86 = scmp.ne.s32.totalorder %s78, %s81
    %p87 = scmp.eq.s32.totalorder %s16, 0
    %p88 = por %p86, %p87
    %p89 = scmp.ne.s32.totalorder %s78, %s81
    %p90 = scmp.eq.s32.totalorder %s21, 3
    %p91 = por %p89, %p90
    %p92 = scmp.ne.s32.totalorder %s81, %s82
    %p93 = scmp.eq.s32.totalorder %s21, 0
    %p94 = por %p92, %p93
    %p95 = scmp.ne.s32.totalorder %s81, %s82
    %p96 = scmp.eq.s32.totalorder %s22, 3
    %p97 = por %p95, %p96
    %p99 = scmp.ne.s32.totalorder %s82, %s98
    %p100 = scmp.eq.s32.totalorder %s22, 0
    %p101 = por %p99, %p100
    %s102 = ssub.s32 %s16, %s23
    %p103 = scmp.eq.s32.totalorder %s102, 0
    %s105 = sadd.s32 %s104, 1
    %s106 = scalar_select %p103, %s104, %s105
    %p109 = pneg %p103
    %p110 = scmp.eq.s32.totalorder %s16, 3
    %p111 = por %p109, %p110
    %p112 = scmp.ne.s32.totalorder %s104, %s107
    %p113 = scmp.eq.s32.totalorder %s16, 0
    %p114 = por %p112, %p113
    %p115 = scmp.ne.s32.totalorder %s104, %s107
    %p116 = scmp.eq.s32.totalorder %s21, 3
    %p117 = por %p115, %p116
    %p118 = scmp.ne.s32.totalorder %s107, %s108
    %p119 = scmp.eq.s32.totalorder %s21, 0
    %p120 = por %p118, %p119
    %p121 = scmp.ne.s32.totalorder %s107, %s108
    %p122 = scmp.eq.s32.totalorder %s22, 3
    %p123 = por %p121, %p122
    %p125 = scmp.ne.s32.totalorder %s108, %s124
    %p126 = scmp.eq.s32.totalorder %s22, 0
    %p127 = por %p125, %p126
    %s128 = ssub.s32 %s16, %s23
    %p129 = scmp.eq.s32.totalorder %s128, 0
    %s131 = sadd.s32 %s130, 1
    %s132 = scalar_select %p129, %s130, %s131
    %p135 = pneg %p129
    %p136 = scmp.eq.s32.totalorder %s16, 3
    %p137 = por %p135, %p136
    %p138 = scmp.ne.s32.totalorder %s130, %s133
    %p139 = scmp.eq.s32.totalorder %s16, 0
    %p140 = por %p138, %p139
    %p141 = scmp.ne.s32.totalorder %s130, %s133
    %p142 = scmp.eq.s32.totalorder %s21, 3
    %p143 = por %p141, %p142
    %p144 = scmp.ne.s32.totalorder %s133, %s134
    %p145 = scmp.eq.s32.totalorder %s21, 0
    %p146 = por %p144, %p145
    %p147 = scmp.ne.s32.totalorder %s133, %s134
    %p148 = scmp.eq.s32.totalorder %s22, 3
    %p149 = por %p147, %p148
    %p151 = scmp.ne.s32.totalorder %s134, %s150
    %p152 = scmp.eq.s32.totalorder %s22, 0
    %p153 = por %p151, %p152
    %s154 = ssub.s32 %s16, %s23
    %p155 = scmp.eq.s32.totalorder %s154, 0
    %s157 = sadd.s32 %s156, 1
    %s158 = scalar_select %p155, %s156, %s157
    %p161 = pneg %p155
    %p162 = scmp.eq.s32.totalorder %s16, 3
    %p163 = por %p161, %p162
    %p164 = scmp.ne.s32.totalorder %s156, %s159
    %p165 = scmp.eq.s32.totalorder %s16, 0
    %p166 = por %p164, %p165
    %p167 = scmp.ne.s32.totalorder %s156, %s159
    %p168 = scmp.eq.s32.totalorder %s21, 3
    %p169 = por %p167, %p168
    %p170 = scmp.ne.s32.totalorder %s159, %s160
    %p171 = scmp.eq.s32.totalorder %s21, 0
    %p172 = por %p170, %p171
    %p173 = scmp.ne.s32.totalorder %s159, %s160
    %p174 = scmp.eq.s32.totalorder %s22, 3
    %p175 = por %p173, %p174
    %p177 = scmp.ne.s32.totalorder %s160, %s176
    %p178 = scmp.eq.s32.totalorder %s22, 0
    %p179 = por %p177, %p178
    %s180 = ssub.s32 %s16, %s23
    %p181 = scmp.eq.s32.totalorder %s180, 0
    %s183 = sadd.s32 %s182, 1
    %s184 = scalar_select %p181, %s182, %s183
    %p187 = pneg %p181
    %p188 = scmp.eq.s32.totalorder %s16, 3
    %p189 = por %p187, %p188
    %p190 = scmp.ne.s32.totalorder %s182, %s185
    %p191 = scmp.eq.s32.totalorder %s16, 0
    %p192 = por %p190, %p191
    %p193 = scmp.ne.s32.totalorder %s182, %s185
    %p194 = scmp.eq.s32.totalorder %s21, 3
    %p195 = por %p193, %p194
    %p196 = scmp.ne.s32.totalorder %s185, %s186
    %p197 = scmp.eq.s32.totalorder %s21, 0
    %p198 = por %p196, %p197
    %p199 = scmp.ne.s32.totalorder %s185, %s186
    %p200 = scmp.eq.s32.totalorder %s22, 3
    %p201 = por %p199, %p200
    %p203 = scmp.ne.s32.totalorder %s186, %s202
    %p204 = scmp.eq.s32.totalorder %s22, 0
    %p205 = por %p203, %p204
    %s206 = ssub.s32 %s16, %s23
    %p207 = scmp.eq.s32.totalorder %s206, 0
    %s209 = sadd.s32 %s208, 1
    %s210 = scalar_select %p207, %s208, %s209
    %p213 = pneg %p207
    %p214 = scmp.eq.s32.totalorder %s16, 3
    %p215 = por %p213, %p214
    %p216 = scmp.ne.s32.totalorder %s208, %s211
    %p217 = scmp.eq.s32.totalorder %s16, 0
    %p218 = por %p216, %p217
    %p219 = scmp.ne.s32.totalorder %s208, %s211
    %p220 = scmp.eq.s32.totalorder %s21, 3
    %p221 = por %p219, %p220
    %p222 = scmp.ne.s32.totalorder %s211, %s212
    %p223 = scmp.eq.s32.totalorder %s21, 0
    %p224 = por %p222, %p223
    %p225 = scmp.ne.s32.totalorder %s211, %s212
    %p226 = scmp.eq.s32.totalorder %s22, 3
    %p227 = por %p225, %p226
    %p229 = scmp.ne.s32.totalorder %s212, %s228
    %p230 = scmp.eq.s32.totalorder %s22, 0
    %p231 = por %p229, %p230
    %s232 = ssub.s32 %s16, %s23
    %p233 = scmp.eq.s32.totalorder %s232, 0
    %s235 = sadd.s32 %s234, 1
    %s236 = scalar_select %p233, %s234, %s235
    %p239 = pneg %p233
    %p240 = scmp.eq.s32.totalorder %s16, 3
    %p241 = por %p239, %p240
    %p242 = scmp.ne.s32.totalorder %s234, %s237
    %p243 = scmp.eq.s32.totalorder %s16, 0
    %p244 = por %p242, %p243
    %p245 = scmp.ne.s32.totalorder %s234, %s237
    %p246 = scmp.eq.s32.totalorder %s21, 3
    %p247 = por %p245, %p246
    %p248 = scmp.ne.s32.totalorder %s237, %s238
    %p249 = scmp.eq.s32.totalorder %s21, 0
    %p250 = por %p248, %p249
    %p251 = scmp.ne.s32.totalorder %s237, %s238
    %p252 = scmp.eq.s32.totalorder %s22, 3
    %p253 = por %p251, %p252
    %p255 = scmp.ne.s32.totalorder %s238, %s254
    %p256 = scmp.eq.s32.totalorder %s22, 0
    %p257 = por %p255, %p256
    %s258 = ssub.s32 %s16, %s23
    %p259 = scmp.eq.s32.totalorder %s258, 0
    %s261 = sadd.s32 %s260, 1
    %s262 = scalar_select %p259, %s260, %s261
    %p265 = pneg %p259
    %p266 = scmp.eq.s32.totalorder %s16, 3
    %p267 = por %p265, %p266
    %p268 = scmp.ne.s32.totalorder %s260, %s263
    %p269 = scmp.eq.s32.totalorder %s16, 0
    %p270 = por %p268, %p269
    %p271 = scmp.ne.s32.totalorder %s260, %s263
    %p272 = scmp.eq.s32.totalorder %s21, 3
    %p273 = por %p271, %p272
    %p274 = scmp.ne.s32.totalorder %s263, %s264
    %p275 = scmp.eq.s32.totalorder %s21, 0
    %p276 = por %p274, %p275
    %p277 = scmp.ne.s32.totalorder %s263, %s264
    %p278 = scmp.eq.s32.totalorder %s22, 3
    %p279 = por %p277, %p278
    %p281 = scmp.ne.s32.totalorder %s264, %s280
    %p282 = scmp.eq.s32.totalorder %s22, 0
    %p283 = por %p281, %p282
    %p284 = scmp.le.s32.totalorder 1, %s16
    %p285 = scmp.lt.s32.totalorder %s16, 5
    %p286 = pnand %p284, %p285
    %p287 = pneg %p286
    // Predicated region
    $region9: #{tpu_custom_call.1} parent=5 // pred_check
      _
    $region10: #{tpu_custom_call.1} parent=5 // pred_check_branch
      %289 = sbr.rel (%p286) target = $region12
    $region11: #{tpu_custom_call.1} parent=5 // pred_region
      %s290 = ssub.s32 %s16, 1
    $region12: #{tpu_custom_call.1} parent=5 // pred_fallthru
      _
    %p291 = scmp.lt.s32.totalorder %s16, 4
    // Predicated region
    $region13: #{tpu_custom_call.1} parent=5 // pred_check
      %p292 = pneg %p291
    $region14: #{tpu_custom_call.1} parent=5 // pred_check_branch
      %294 = sbr.rel (%p292) target = $region16
    $region15: #{tpu_custom_call.1} parent=5 // pred_region
      // Predicated region
      $region17: #{tpu_custom_call.1} parent=15 // pred_check
        %p295 = pneg %p36
      $region18: #{tpu_custom_call.1} parent=15 // pred_check_branch
        %297 = sbr.rel (%p295) target = $region20
      $region19: #{tpu_custom_call.1} parent=15 // pred_region
        %p298 = scmp.lt.s32.totalorder %s16, 3
        %s299 = scalar_select %p298, %s16, 3
        %s300 = smul.addr %s299, 8
        %s301 = scalar_lea.vmem %s0, %s300
      $region20: #{tpu_custom_call.1} parent=15 // pred_fallthru
        _
      // Predicated region
      $region21: #{tpu_custom_call.1} parent=15 // pred_check
        %p302 = pneg %p62
      $region22: #{tpu_custom_call.1} parent=15 // pred_check_branch
        %304 = sbr.rel (%p302) target = $region24
      $region23: #{tpu_custom_call.1} parent=15 // pred_region
        %p305 = scmp.lt.s32.totalorder %s16, 3
        %s306 = scalar_select %p305, %s16, 3
        %s307 = smul.addr %s306, 8
        %s308 = scalar_lea.vmem %s1, %s307
      $region24: #{tpu_custom_call.1} parent=15 // pred_fallthru
        _
      // Predicated region
      $region25: #{tpu_custom_call.1} parent=15 // pred_check
        %p309 = pneg %p88
      $region26: #{tpu_custom_call.1} parent=15 // pred_check_branch
        %311 = sbr.rel (%p309) target = $region28
      $region27: #{tpu_custom_call.1} parent=15 // pred_region
        %p312 = scmp.lt.s32.totalorder %s16, 3
        %s313 = scalar_select %p312, %s16, 3
        %s314 = smul.addr %s313, 8
        %s315 = scalar_lea.vmem %s2, %s314
      $region28: #{tpu_custom_call.1} parent=15 // pred_fallthru
        _
      // Predicated region
      $region29: #{tpu_custom_call.1} parent=15 // pred_check
        %p316 = pneg %p114
      $region30: #{tpu_custom_call.1} parent=15 // pred_check_branch
        %318 = sbr.rel (%p316) target = $region32
      $region31: #{tpu_custom_call.1} parent=15 // pred_region
        %p319 = scmp.lt.s32.totalorder %s16, 3
        %s320 = scalar_select %p319, %s16, 3
        %s321 = smul.addr %s320, 8
        %s322 = scalar_lea.vmem %s3, %s321
      $region32: #{tpu_custom_call.1} parent=15 // pred_fallthru
        _
      // Predicated region
      $region33: #{tpu_custom_call.1} parent=15 // pred_check
        %p323 = pneg %p140
      $region34: #{tpu_custom_call.1} parent=15 // pred_check_branch
        %325 = sbr.rel (%p323) target = $region36
      $region35: #{tpu_custom_call.1} parent=15 // pred_region
        %p326 = scmp.lt.s32.totalorder %s16, 3
        %s327 = scalar_select %p326, %s16, 3
        %s328 = smul.addr %s327, 8
        %s329 = scalar_lea.vmem %s4, %s328
      $region36: #{tpu_custom_call.1} parent=15 // pred_fallthru
        _
      // Predicated region
      $region37: #{tpu_custom_call.1} parent=15 // pred_check
        %p330 = pneg %p166
      $region38: #{tpu_custom_call.1} parent=15 // pred_check_branch
        %332 = sbr.rel (%p330) target = $region40
      $region39: #{tpu_custom_call.1} parent=15 // pred_region
        %p333 = scmp.lt.s32.totalorder %s16, 3
        %s334 = scalar_select %p333, %s16, 3
        %s335 = smul.addr %s334, 8
        %s336 = scalar_lea.vmem %s5, %s335
      $region40: #{tpu_custom_call.1} parent=15 // pred_fallthru
        _
      // Predicated region
      $region41: #{tpu_custom_call.1} parent=15 // pred_check
        %p337 = pneg %p192
      $region42: #{tpu_custom_call.1} parent=15 // pred_check_branch
        %339 = sbr.rel (%p337) target = $region44
      $region43: #{tpu_custom_call.1} parent=15 // pred_region
        %p340 = scmp.lt.s32.totalorder %s16, 3
        %s341 = scalar_select %p340, %s16, 3
        %s342 = smul.addr %s341, 8
        %s343 = scalar_lea.vmem %s6, %s342
      $region44: #{tpu_custom_call.1} parent=15 // pred_fallthru
        _
    $region16: #{tpu_custom_call.1} parent=5 // pred_fallthru
      _
    %p344 = scmp.le.s32.totalorder 1, %s16
    %p345 = scmp.lt.s32.totalorder %s16, 5
    %p346 = pnand %p344, %p345
    %p347 = pneg %p346
    // Predicated region
    $region45: #{tpu_custom_call.1} parent=5 // pred_check
      _
    $region46: #{tpu_custom_call.1} parent=5 // pred_check_branch
      %349 = sbr.rel (%p346) target = $region48
    $region47: #{tpu_custom_call.1} parent=5 // pred_region
      %s350 = ssub.s32 %s16, 1
      %p351 = scmp.lt.s32.totalorder %s21, 3
      %s352 = scalar_select %p351, %s21, 3
      %s353 = smul.addr %s352, 8
      %s354 = scalar_lea.vmem %s0, %s353
      %p355 = pneg %p42
      %p356 = pneg %p39
      %p357 = scmp.lt.s32.totalorder %s21, 3
      %s358 = scalar_select %p357, %s21, 3
      %s359 = smul.addr %s358, 8
      %s360 = scalar_lea.vmem %s1, %s359
      %p361 = pneg %p68
      %p362 = pneg %p65
      %p363 = scmp.lt.s32.totalorder %s21, 3
      %s364 = scalar_select %p363, %s21, 3
      %s365 = smul.addr %s364, 8
      %s366 = scalar_lea.vmem %s2, %s365
      %p367 = pneg %p94
      %p368 = pneg %p91
      %p369 = scmp.lt.s32.totalorder %s21, 3
      %s370 = scalar_select %p369, %s21, 3
      %s371 = smul.addr %s370, 8
      %s372 = scalar_lea.vmem %s3, %s371
      %p373 = pneg %p120
      %p374 = pneg %p117
      %p375 = scmp.lt.s32.totalorder %s21, 3
      %s376 = scalar_select %p375, %s21, 3
      %s377 = smul.addr %s376, 8
      %s378 = scalar_lea.vmem %s4, %s377
      %p379 = pneg %p146
      %p380 = pneg %p143
      %p381 = scmp.lt.s32.totalorder %s21, 3
      %s382 = scalar_select %p381, %s21, 3
      %s383 = smul.addr %s382, 8
      %s384 = scalar_lea.vmem %s5, %s383
      %p385 = pneg %p172
      %p386 = pneg %p169
      %p387 = scmp.lt.s32.totalorder %s21, 3
      %s388 = scalar_select %p387, %s21, 3
      %s389 = smul.addr %s388, 8
      %s390 = scalar_lea.vmem %s6, %s389
      %p391 = pneg %p198
      %p392 = pneg %p195
      %p393 = pneg %p224
      %p394 = pneg %p221
      %p395 = scmp.lt.s32.totalorder %s21, 3
      %s396 = scalar_select %p395, %s21, 3
      %s397 = smul.addr %s396, 8
      %s398 = scalar_lea.vmem %s7, %s397
      %p399 = pneg %p250
      %p400 = pneg %p247
      %p401 = scmp.lt.s32.totalorder %s21, 3
      %s402 = scalar_select %p401, %s21, 3
      %s403 = smul.addr %s402, 8
      %s404 = scalar_lea.vmem %s8, %s403
      %p405 = pneg %p276
      %p406 = pneg %p273
      %p407 = scmp.lt.s32.totalorder %s21, 3
      %s408 = scalar_select %p407, %s21, 3
      %s409 = smul.addr %s408, 8
      %s410 = scalar_lea.vmem %s9, %s409
      %p411 = scmp.lt.s32.totalorder %s21, 3
      %s412 = scalar_select %p411, %s21, 3
      %s413 = smul.addr %s412, 8
      %s414 = scalar_lea.vmem %s0, %s413
      %p415 = scmp.lt.s32.totalorder %s21, 3
      %s416 = scalar_select %p415, %s21, 3
      %s417 = smul.addr %s416, 8
      %s418 = scalar_lea.vmem %s1, %s417
      %p419 = scmp.lt.s32.totalorder %s21, 3
      %s420 = scalar_select %p419, %s21, 3
      %s421 = smul.addr %s420, 8
      %s422 = scalar_lea.vmem %s2, %s421
      %p423 = scmp.lt.s32.totalorder %s21, 3
      %s424 = scalar_select %p423, %s21, 3
      %s425 = smul.addr %s424, 8
      %s426 = scalar_lea.vmem %s3, %s425
      %p427 = scmp.lt.s32.totalorder %s21, 3
      %s428 = scalar_select %p427, %s21, 3
      %s429 = smul.addr %s428, 8
      %s430 = scalar_lea.vmem %s4, %s429
      %p431 = scmp.lt.s32.totalorder %s21, 3
      %s432 = scalar_select %p431, %s21, 3
      %s433 = smul.addr %s432, 8
      %s434 = scalar_lea.vmem %s5, %s433
      %p435 = scmp.lt.s32.totalorder %s21, 3
      %s436 = scalar_select %p435, %s21, 3
      %s437 = smul.addr %s436, 8
      %s438 = scalar_lea.vmem %s6, %s437
      %p439 = scmp.lt.s32.totalorder %s21, 3
      %s440 = scalar_select %p439, %s21, 3
      %s441 = smul.addr %s440, 8
      %s442 = scalar_lea.vmem %s7, %s441
      %p443 = scmp.lt.s32.totalorder %s21, 3
      %s444 = scalar_select %p443, %s21, 3
      %s445 = smul.addr %s444, 8
      %s446 = scalar_lea.vmem %s8, %s445
      %p447 = scmp.lt.s32.totalorder %s21, 3
      %s448 = scalar_select %p447, %s21, 3
      %s449 = smul.addr %s448, 8
      %s450 = scalar_lea.vmem %s9, %s449
      %v451 = vld [vmem:[%s414] sm:$0xff]
      %v452 = vsub.f32 1.0, %v451
      %v453 = vld [vmem:[%s418] sm:$0xff]
      %v454 = vmul.f32 %v451, %v453
      %v455 = vld [vmem:[%s430] sm:$0xff]
      %v456 = vmul.f32 %v452, %v455
      %v457 = vadd.f32 %v454, %v456
      %vm458 = vcmask 195584
      %459 = vst.msk [vmem:[%s442] sm:$0xff] %vm458, %v457
      %v460 = vld [vmem:[%s422] sm:$0xff]
      %v461 = vmul.f32 %v451, %v460
      %v462 = vld [vmem:[%s434] sm:$0xff]
      %v463 = vmul.f32 %v452, %v462
      %v464 = vadd.f32 %v461, %v463
      %465 = vst.msk [vmem:[%s446] sm:$0xff] %vm458, %v464
      %v466 = vld [vmem:[%s426] sm:$0xff]
      %v467 = vmul.f32 %v451, %v466
      %v468 = vld [vmem:[%s438] sm:$0xff]
      %v469 = vmul.f32 %v452, %v468
      %v470 = vadd.f32 %v467, %v469
      %471 = vst.msk [vmem:[%s450] sm:$0xff] %vm458, %v470
      %p472 = scmp.lt.s32.totalorder %s21, 3
      %s473 = scalar_select %p472, %s21, 3
      %s474 = smul.addr %s473, 8
      %s475 = scalar_lea.vmem %s7, %s474
      %p476 = scmp.lt.s32.totalorder %s21, 3
      %s477 = scalar_select %p476, %s21, 3
      %s478 = smul.addr %s477, 8
      %s479 = scalar_lea.vmem %s8, %s478
      %p480 = scmp.lt.s32.totalorder %s21, 3
      %s481 = scalar_select %p480, %s21, 3
      %s482 = smul.addr %s481, 8
      %s483 = scalar_lea.vmem %s9, %s482
      // Predicated region
      $region49: #{tpu_custom_call.1} parent=47 // pred_check
        %p484 = pneg %p221
      $region50: #{tpu_custom_call.1} parent=47 // pred_check_branch
        %486 = sbr.rel (%p484) target = $region52
      $region51: #{tpu_custom_call.1} parent=47 // pred_region
        _
      $region52: #{tpu_custom_call.1} parent=47 // pred_fallthru
        _
      // Predicated region
      $region53: #{tpu_custom_call.1} parent=47 // pred_check
        %p487 = pneg %p247
      $region54: #{tpu_custom_call.1} parent=47 // pred_check_branch
        %489 = sbr.rel (%p487) target = $region56
      $region55: #{tpu_custom_call.1} parent=47 // pred_region
        _
      $region56: #{tpu_custom_call.1} parent=47 // pred_fallthru
        _
      // Predicated region
      $region57: #{tpu_custom_call.1} parent=47 // pred_check
        %p490 = pneg %p273
      $region58: #{tpu_custom_call.1} parent=47 // pred_check_branch
        %492 = sbr.rel (%p490) target = $region60
      $region59: #{tpu_custom_call.1} parent=47 // pred_region
        _
      $region60: #{tpu_custom_call.1} parent=47 // pred_fallthru
        _
    $region48: #{tpu_custom_call.1} parent=5 // pred_fallthru
      _
    %p493 = scmp.le.s32.totalorder 2, %s16
    // Predicated region
    $region61: #{tpu_custom_call.1} parent=5 // pred_check
      %p494 = pneg %p493
    $region62: #{tpu_custom_call.1} parent=5 // pred_check_branch
      %496 = sbr.rel (%p494) target = $region64
    $region63: #{tpu_custom_call.1} parent=5 // pred_region
      %s497 = ssub.s32 %s16, 2
      // Predicated region
      $region65: #{tpu_custom_call.1} parent=63 // pred_check
        %p498 = pneg %p227
      $region66: #{tpu_custom_call.1} parent=63 // pred_check_branch
        %500 = sbr.rel (%p498) target = $region68
      $region67: #{tpu_custom_call.1} parent=63 // pred_region
        %p501 = scmp.lt.s32.totalorder %s22, 3
        %s502 = scalar_select %p501, %s22, 3
        %s503 = smul.addr %s502, 8
        %s504 = scalar_lea.vmem %s7, %s503
      $region68: #{tpu_custom_call.1} parent=63 // pred_fallthru
        _
      // Predicated region
      $region69: #{tpu_custom_call.1} parent=63 // pred_check
        %p505 = pneg %p253
      $region70: #{tpu_custom_call.1} parent=63 // pred_check_branch
        %507 = sbr.rel (%p505) target = $region72
      $region71: #{tpu_custom_call.1} parent=63 // pred_region
        %p508 = scmp.lt.s32.totalorder %s22, 3
        %s509 = scalar_select %p508, %s22, 3
        %s510 = smul.addr %s509, 8
        %s511 = scalar_lea.vmem %s8, %s510
      $region72: #{tpu_custom_call.1} parent=63 // pred_fallthru
        _
      // Predicated region
      $region73: #{tpu_custom_call.1} parent=63 // pred_check
        %p512 = pneg %p279
      $region74: #{tpu_custom_call.1} parent=63 // pred_check_branch
        %514 = sbr.rel (%p512) target = $region76
      $region75: #{tpu_custom_call.1} parent=63 // pred_region
        %p515 = scmp.lt.s32.totalorder %s22, 3
        %s516 = scalar_select %p515, %s22, 3
        %s517 = smul.addr %s516, 8
        %s518 = scalar_lea.vmem %s9, %s517
      $region76: #{tpu_custom_call.1} parent=63 // pred_fallthru
        _
    $region64: #{tpu_custom_call.1} parent=5 // pred_fallthru
      _
  $region6: #{tpu_custom_call.1} parent=0 // loop_footer
    %s20 = sadd.s32 1, %s16
  $region7: #{tpu_custom_call.1} parent=0 // loop_footer_branch
    %15 = sbr.rel target = $region3
  $region8: #{tpu_custom_call.1} parent=0 // loop_exit
    _

</llo_original>
